<compile_context>
chip_gen: v5e
topology: v5e:2x2
jax: 0.10.0
libtpu: 0.0.40
codegen_flags: <defaults>
</compile_context>

<pallas_src>
import functools
import math

import jax
import jax.numpy as jnp
from jax.experimental import pallas as pl
from jax.experimental.pallas import tpu as pltpu

LANE = 128
SUB = 8


def _round_up(x, m):
    return ((x + m - 1) // m) * m


def fcnet_kernel(x_ref, wcat_ref, bcat_ref, w2_ref, b2_ref, o_ref, *, d1_p, out_dim):
    """One batch tile: fused (layer1 | shortcut) matmul on x, then layer 2, add."""
    x = x_ref[...]

    # Fused x-side matmul: columns [0, d1_p) are layer-1, [d1_p, end) are the
    # shortcut.  Both segments are 128-lane aligned, so the slices below are
    # vreg-aligned views (no cross-lane relayout).
    y = jnp.dot(x, wcat_ref[...], preferred_element_type=jnp.float32) + bcat_ref[...]

    h = jnp.maximum(y[:, :d1_p], 0.0)   # layer 1 + ReLU (padded cols are exactly 0)
    s = y[:, d1_p:]                     # shortcut (its bias already folded in)

    # Layer 2 + ReLU.  Padded rows/cols of w2 are zero, so padding is inert.
    h2 = jnp.dot(h, w2_ref[...], preferred_element_type=jnp.float32) + b2_ref[...]
    h2 = jnp.maximum(h2, 0.0)

    z = h2 + s
    # Store only the real output columns (masked vst; output array is 48-wide,
    # so there is no 128-lane store amplification and no post-kernel slice).
    o_ref[...] = z[:, :out_dim].astype(o_ref.dtype)


def pack_fcnet_params(params, dtype=jnp.float32):
    """Build fused / lane-padded parameter arrays ONCE (hoisted out of forward).

    params: (w1, b1, w2, b2, ws, bs) with weights stored as (in, out).
    """
    w1, b1, w2, b2, ws, bs = params
    in_dim, d1 = w1.shape
    out_dim = w2.shape[1]
    d1_p = _round_up(d1, LANE)
    out_p = _round_up(out_dim, LANE)

    wcat = jnp.zeros((in_dim, d1_p + out_p), dtype)
    wcat = wcat.at[:, :d1].set(w1.astype(dtype))
    wcat = wcat.at[:, d1_p:d1_p + out_dim].set(ws.astype(dtype))

    bcat = jnp.zeros((1, d1_p + out_p), dtype)
    bcat = bcat.at[:, :d1].set(b1.astype(dtype).reshape(1, d1))
    bcat = bcat.at[:, d1_p:d1_p + out_dim].set(bs.astype(dtype).reshape(1, out_dim))

    w2p = jnp.zeros((d1_p, out_p), dtype)
    w2p = w2p.at[:d1, :out_dim].set(w2.astype(dtype))
    b2p = jnp.zeros((1, out_p), dtype)
    b2p = b2p.at[:, :out_dim].set(b2.astype(dtype).reshape(1, out_dim))

    return dict(wcat=wcat, bcat=bcat, w2p=w2p, b2p=b2p,
                in_dim=in_dim, d1_p=d1_p, out_p=out_p, out_dim=out_dim)


def fcnet_forward(x, packed, *, tile_b=4096, vmem_limit_bytes=48 * 1024 * 1024):
    """Pallas forward pass.  x: (batch, dims[0]); packed from pack_fcnet_params."""
    batch, in_dim = x.shape
    assert in_dim == packed["in_dim"], (in_dim, packed["in_dim"])
    d1_p = packed["d1_p"]
    out_p = packed["out_p"]
    out_dim = packed["out_dim"]
    wcat, bcat, w2p, b2p = packed["wcat"], packed["bcat"], packed["w2p"], packed["b2p"]

    # Batch tile: sublane-aligned, capped by the (rounded-up) batch.  No jnp.pad
    # of x and no output slice: Pallas clips the boundary block's writes.
    tb = _round_up(min(tile_b, _round_up(batch, SUB)), SUB)
    grid = (pl.cdiv(batch, tb),)

    kernel = functools.partial(fcnet_kernel, d1_p=d1_p, out_dim=out_dim)

    flops = 2 * batch * (in_dim * (d1_p + out_p) + d1_p * out_p)
    bytes_accessed = 4 * (batch * (in_dim + out_dim)
                          + wcat.size + bcat.size + w2p.size + b2p.size)

    return pl.pallas_call(
        kernel,
        out_shape=jax.ShapeDtypeStruct((batch, out_dim), x.dtype),
        grid=grid,
        in_specs=[
            pl.BlockSpec((tb, in_dim), lambda i: (i, 0)),                # x: pipelined
            pl.BlockSpec((in_dim, d1_p + out_p), lambda i: (0, 0)),      # fused W (resident)
            pl.BlockSpec((1, d1_p + out_p), lambda i: (0, 0)),           # fused b (resident)
            pl.BlockSpec((d1_p, out_p), lambda i: (0, 0)),               # W2 (resident)
            pl.BlockSpec((1, out_p), lambda i: (0, 0)),                  # b2 (resident)
        ],
        out_specs=pl.BlockSpec((tb, out_dim), lambda i: (i, 0)),         # lane-exact out
        compiler_params=pltpu.CompilerParams(
            dimension_semantics=("parallel",),
            vmem_limit_bytes=vmem_limit_bytes,
        ),
        cost_estimate=pl.CostEstimate(
            flops=flops, transcendentals=0, bytes_accessed=bytes_accessed),
    )(x, wcat, bcat, w2p, b2p)


def init_linear(key, in_dim, out_dim, dtype=jnp.float32):
    """PyTorch nn.Linear-style init: uniform(+-1/sqrt(in)).

    Weight returned as (in, out) (transposed vs. torch's (out, in)); bias (1, out).
    """
    kw, kb = jax.random.split(key)
    bound = 1.0 / math.sqrt(in_dim)
    w = jax.random.uniform(kw, (in_dim, out_dim), dtype, minval=-bound, maxval=bound)
    b = jax.random.uniform(kb, (1, out_dim), dtype, minval=-bound, maxval=bound)
    return w, b


def fcnet_reference(x, params):
    """Plain-JAX reference matching the PyTorch forward semantics."""
    w1, b1, w2, b2, ws, bs = params
    h = jnp.maximum(x @ w1 + b1, 0.0)
    h = jnp.maximum(h @ w2 + b2, 0.0)
    return h + (x @ ws + bs)


if __name__ == "__main__":
    dims = [32, 64, 48]      # dims[0] != dims[-1] -> linear shortcut branch
    batch = 8

    key = jax.random.PRNGKey(0)
    kx, k1, k2, ks = jax.random.split(key, 4)

    x = jax.random.normal(kx, (batch, dims[0]), jnp.float32)
    w1, b1 = init_linear(k1, dims[0], dims[1])
    w2, b2 = init_linear(k2, dims[1], dims[2])
    ws, bs = init_linear(ks, dims[0], dims[2])
    params = (w1, b1, w2, b2, ws, bs)

    packed = pack_fcnet_params(params)           # built once, reused every call
    out = fcnet_forward(x, packed)
    out = jax.block_until_ready(out)

    ref = fcnet_reference(x, params)
    assert out.shape == (batch, dims[-1]), out.shape
    assert jnp.allclose(out, ref, atol=1e-4, rtol=1e-4), "mismatch vs reference"

    print("KERNEL_OK")
</pallas_src>

<mosaic_0001>
module attributes {stable_mosaic.version = 11 : i64} {
  func.func @fcnet_kernel(%arg0: i32, %arg1: memref<8x32xf32, #tpu.memory_space<vmem>>, %arg2: memref<32x256xf32, #tpu.memory_space<vmem>>, %arg3: memref<1x256xf32, #tpu.memory_space<vmem>>, %arg4: memref<128x128xf32, #tpu.memory_space<vmem>>, %arg5: memref<1x128xf32, #tpu.memory_space<vmem>>, %arg6: memref<8x48xf32, #tpu.memory_space<vmem>>) attributes {dimension_semantics = [#tpu.dimension_semantics<parallel>], iteration_bounds = array<i64: 1>, scalar_prefetch = 0 : i64, scratch_operands = 0 : i64, tpu.core_type = #tpu.core_type<tc>, window_params = [{transform_indices = @transform_0, window_bounds = array<i64: 8, 32>}, {pipeline_mode = #tpu.pipeline_mode<synchronous>, transform_indices = @transform_1, window_bounds = array<i64: 32, 256>}, {pipeline_mode = #tpu.pipeline_mode<synchronous>, transform_indices = @transform_2, window_bounds = array<i64: 1, 256>}, {pipeline_mode = #tpu.pipeline_mode<synchronous>, transform_indices = @transform_3, window_bounds = array<i64: 128, 128>}, {pipeline_mode = #tpu.pipeline_mode<synchronous>, transform_indices = @transform_4, window_bounds = array<i64: 1, 128>}, {transform_indices = @transform_5, window_bounds = array<i64: 8, 48>}]} {
    %c0 = arith.constant 0 : index
    %c0_0 = arith.constant 0 : index
    %0 = vector.load %arg1[%c0, %c0_0] : memref<8x32xf32, #tpu.memory_space<vmem>>, vector<8x32xf32>
    %c0_1 = arith.constant 0 : index
    %c0_2 = arith.constant 0 : index
    %1 = vector.load %arg2[%c0_1, %c0_2] : memref<32x256xf32, #tpu.memory_space<vmem>>, vector<32x256xf32>
    %cst = arith.constant dense<0.000000e+00> : vector<8x256xf32>
    %2 = tpu.matmul %0, %1, %cst {dimension_numbers = #tpu.dot_dimension_numbers<[1], [0], [0], [1], [0, 0, 1, 1], [], []>} : vector<8x32xf32>, vector<32x256xf32>, vector<8x256xf32> -> vector<8x256xf32>
    %c0_3 = arith.constant 0 : index
    %c0_4 = arith.constant 0 : index
    %3 = vector.load %arg3[%c0_3, %c0_4] : memref<1x256xf32, #tpu.memory_space<vmem>>, vector<1x256xf32>
    %4 = vector.broadcast %3 : vector<1x256xf32> to vector<8x256xf32>
    %5 = arith.addf %2, %4 : vector<8x256xf32>
    %6 = vector.extract_strided_slice %5 {offsets = [0, 0], sizes = [8, 128], strides = [1, 1]} : vector<8x256xf32> to vector<8x128xf32>
    %cst_5 = arith.constant 0.000000e+00 : f32
    %7 = vector.broadcast %cst_5 : f32 to vector<8x128xf32>
    %8 = arith.maximumf %6, %7 : vector<8x128xf32>
    %9 = vector.extract_strided_slice %5 {offsets = [0, 128], sizes = [8, 128], strides = [1, 1]} : vector<8x256xf32> to vector<8x128xf32>
    %c0_6 = arith.constant 0 : index
    %c0_7 = arith.constant 0 : index
    %10 = vector.load %arg4[%c0_6, %c0_7] : memref<128x128xf32, #tpu.memory_space<vmem>>, vector<128x128xf32>
    %cst_8 = arith.constant dense<0.000000e+00> : vector<8x128xf32>
    %11 = tpu.matmul %8, %10, %cst_8 {dimension_numbers = #tpu.dot_dimension_numbers<[1], [0], [0], [1], [0, 0, 1, 1], [], []>} : vector<8x128xf32>, vector<128x128xf32>, vector<8x128xf32> -> vector<8x128xf32>
    %c0_9 = arith.constant 0 : index
    %c0_10 = arith.constant 0 : index
    %12 = vector.load %arg5[%c0_9, %c0_10] : memref<1x128xf32, #tpu.memory_space<vmem>>, vector<1x128xf32>
    %13 = vector.broadcast %12 : vector<1x128xf32> to vector<8x128xf32>
    %14 = arith.addf %11, %13 : vector<8x128xf32>
    %cst_11 = arith.constant 0.000000e+00 : f32
    %15 = vector.broadcast %cst_11 : f32 to vector<8x128xf32>
    %16 = arith.maximumf %14, %15 : vector<8x128xf32>
    %17 = arith.addf %16, %9 : vector<8x128xf32>
    %18 = vector.extract_strided_slice %17 {offsets = [0, 0], sizes = [8, 48], strides = [1, 1]} : vector<8x128xf32> to vector<8x48xf32>
    %c0_12 = arith.constant 0 : index
    %c0_13 = arith.constant 0 : index
    %19 = vector.load %arg6[%c0_12, %c0_13] : memref<8x48xf32, #tpu.memory_space<vmem>>, vector<8x48xf32>
    tpu.vector_store %arg6[%c0_12, %c0_13], %18 {strides = array<i32>} : memref<8x48xf32, #tpu.memory_space<vmem>>, vector<8x48xf32>,
    return
  }
  func.func @transform_0(%arg0: i32) -> (i32, i32) {
    %c0_i32 = arith.constant 0 : i32
    %c0_i32_0 = arith.constant 0 : i32
    return %arg0, %c0_i32 : i32, i32
  }
  func.func @transform_1(%arg0: i32) -> (i32, i32) {
    %c0_i32 = arith.constant 0 : i32
    %c0_i32_0 = arith.constant 0 : i32
    %c0_i32_1 = arith.constant 0 : i32
    return %c0_i32, %c0_i32_0 : i32, i32
  }
  func.func @transform_2(%arg0: i32) -> (i32, i32) {
    %c0_i32 = arith.constant 0 : i32
    %c0_i32_0 = arith.constant 0 : i32
    %c0_i32_1 = arith.constant 0 : i32
    return %c0_i32, %c0_i32_0 : i32, i32
  }
  func.func @transform_3(%arg0: i32) -> (i32, i32) {
    %c0_i32 = arith.constant 0 : i32
    %c0_i32_0 = arith.constant 0 : i32
    %c0_i32_1 = arith.constant 0 : i32
    return %c0_i32, %c0_i32_0 : i32, i32
  }
  func.func @transform_4(%arg0: i32) -> (i32, i32) {
    %c0_i32 = arith.constant 0 : i32
    %c0_i32_0 = arith.constant 0 : i32
    %c0_i32_1 = arith.constant 0 : i32
    return %c0_i32, %c0_i32_0 : i32, i32
  }
  func.func @transform_5(%arg0: i32) -> (i32, i32) {
    %c0_i32 = arith.constant 0 : i32
    %c0_i32_0 = arith.constant 0 : i32
    return %arg0, %c0_i32 : i32, i32
  }
}

</mosaic_0001>

<llo_original>
// kernel: tpu_custom_call.1
$region0: #{tpu_custom_call.1}
  #allocation0 [shape = 'u32[]', space=smem, size = 0x4, offset = 0x4, fixed_abs, tag = 'smem constant byte address 0x4 - core index']
  #allocation1 [shape = 'u32[72,128]{1,0:T(1,128)}', space=vmem, size = 0x9000, scoped, tag = 'internal scratch']
  %s0 = inlined_call_operand.hbm [shape: f32[8,32], index: 0, kind: input, shape index: {}]
  %s1 = inlined_call_operand.hbm [shape: f32[32,256], index: 1, kind: input, shape index: {}]
  %s2 = inlined_call_operand.hbm [shape: f32[1,256], index: 2, kind: input, shape index: {}]
  %s3 = inlined_call_operand.hbm [shape: f32[128,128], index: 3, kind: input, shape index: {}]
  %s4 = inlined_call_operand.vmem [shape: f32[1,128], index: 4, kind: input, shape index: {}]
  %s5 = inlined_call_operand.hbm [shape: f32[8,48], index: 5, kind: output, shape index: {}]
  %s6 = sld [smem:[#allocation0]]
  $region46: #{tpu_custom_call.1} parent=0
    _
  %s8 = ssub.s32 1, %s6
  %s9 = scalar_select 0, %s8, %s6
  $region1: #{tpu_custom_call.1} parent=0
    #allocation2 [shape = 'u8[4096]{0}', space=vmem, size = 0x1000, scoped, tag = 'input window, operand 0, single buffered']
    #allocation3 [shape = 's32[1]{0}', space=sflag, size = 0x4, scoped, tag = 'scoped memory for tpu_custom_call.1']
    #allocation4 [shape = 's32[1]{0}', space=sflag, size = 0x4, scoped, tag = 'scoped memory for tpu_custom_call.1']
    #allocation5 [shape = 'u8[32768]{0}', space=vmem, size = 0x8000, scoped, tag = 'input window, operand 1, single buffered']
    #allocation6 [shape = 's32[1]{0}', space=sflag, size = 0x4, scoped, tag = 'scoped memory for tpu_custom_call.1']
    #allocation7 [shape = 'u8[1024]{0}', space=vmem, size = 0x400, scoped, tag = 'input window, operand 2, single buffered']
    #allocation8 [shape = 'u8[65536]{0}', space=vmem, size = 0x10000, scoped, tag = 'input window, operand 3, single buffered']
    #allocation9 [shape = 's32[1]{0}', space=sflag, size = 0x4, scoped, tag = 'scoped memory for tpu_custom_call.1']
    #allocation10 [shape = 'u8[4096]{0}', space=vmem, size = 0x1000, scoped, tag = 'output window, operand 0, single buffered']
    %10 = vsyncpa [#allocation3], 0
    %11 = vsyncpa [#allocation6], 0
    %12 = vsyncpa [#allocation9], 0
    %13 = vsyncpa [#allocation4], 0
    // Predicated region
    $region2: #{tpu_custom_call.1} parent=1 // pred_check
      _
    $region3: #{tpu_custom_call.1} parent=1 // pred_check_branch
      %15 = sbr.rel (0) target = $region5
    $region4: #{tpu_custom_call.1} parent=1 // pred_region
      %17 = vsyncadd [#allocation3], 0
      %s19 = sshll.u32 %s0, 4
      %s20 = int_to_ptr.hbm [resolvable:$true] %s19
      %s21 = sshll.u32 [#allocation2], 4
      %s22 = int_to_ptr.vmem [resolvable:$true] %s21
      %24 = dma.hbm_to_vmem [thread:$0]  %s20, 128, %s22, [#allocation3]
    $region5: #{tpu_custom_call.1} parent=1 // pred_fallthru
      _
    // Predicated region
    $region6: #{tpu_custom_call.1} parent=1 // pred_check
      _
    $region7: #{tpu_custom_call.1} parent=1 // pred_check_branch
      %26 = sbr.rel (0) target = $region9
    $region8: #{tpu_custom_call.1} parent=1 // pred_region
      %28 = vsyncadd [#allocation6], 0
      %s29 = sshll.u32 %s1, 4
      %s30 = int_to_ptr.hbm [resolvable:$true] %s29
      %s31 = sshll.u32 [#allocation5], 4
      %s32 = int_to_ptr.vmem [resolvable:$true] %s31
      %37 = dma.hbm_to_vmem [thread:$0]  %s30, 1024, %s32, [#allocation6], 256, 256, 16
    $region9: #{tpu_custom_call.1} parent=1 // pred_fallthru
      _
    // Predicated region
    $region10: #{tpu_custom_call.1} parent=1 // pred_check
      _
    $region11: #{tpu_custom_call.1} parent=1 // pred_check_branch
      %39 = sbr.rel (0) target = $region13
    $region12: #{tpu_custom_call.1} parent=1 // pred_region
      %41 = vsyncadd [#allocation6], 0
      %s43 = sshll.u32 %s2, 4
      %s44 = int_to_ptr.hbm [resolvable:$true] %s43
      %s45 = sshll.u32 [#allocation7], 4
      %s46 = int_to_ptr.vmem [resolvable:$true] %s45
      %48 = dma.hbm_to_vmem [thread:$0]  %s44, 32, %s46, [#allocation6]
    $region13: #{tpu_custom_call.1} parent=1 // pred_fallthru
      _
    // Predicated region
    $region14: #{tpu_custom_call.1} parent=1 // pred_check
      _
    $region15: #{tpu_custom_call.1} parent=1 // pred_check_branch
      %50 = sbr.rel (0) target = $region17
    $region16: #{tpu_custom_call.1} parent=1 // pred_region
      %52 = vsyncadd [#allocation9], 0
      %s53 = sshll.u32 %s3, 4
      %s54 = int_to_ptr.hbm [resolvable:$true] %s53
      %s55 = sshll.u32 [#allocation8], 4
      %s56 = int_to_ptr.vmem [resolvable:$true] %s55
      %61 = dma.hbm_to_vmem [thread:$0]  %s54, 2048, %s56, [#allocation9], 128, 128, 8
    $region17: #{tpu_custom_call.1} parent=1 // pred_fallthru
      _
    // Predicated region
    $region18: #{tpu_custom_call.1} parent=1 // pred_check
      _
    $region19: #{tpu_custom_call.1} parent=1 // pred_check_branch
      %63 = sbr.rel (0) target = $region21
    $region20: #{tpu_custom_call.1} parent=1 // pred_region
      _
    $region21: #{tpu_custom_call.1} parent=1 // pred_fallthru
      _
    // Predicated region
    $region22: #{tpu_custom_call.1} parent=1 // pred_check
      _
    $region23: #{tpu_custom_call.1} parent=1 // pred_check_branch
      %65 = sbr.rel (0) target = $region25
    $region24: #{tpu_custom_call.1} parent=1 // pred_region
      %67 = dma.done [#allocation3], 128
    $region25: #{tpu_custom_call.1} parent=1 // pred_fallthru
      _
    // Predicated region
    $region26: #{tpu_custom_call.1} parent=1 // pred_check
      _
    $region27: #{tpu_custom_call.1} parent=1 // pred_check_branch
      %69 = sbr.rel (0) target = $region29
    $region28: #{tpu_custom_call.1} parent=1 // pred_region
      %71 = dma.done [#allocation6], 1024
    $region29: #{tpu_custom_call.1} parent=1 // pred_fallthru
      _
    // Predicated region
    $region30: #{tpu_custom_call.1} parent=1 // pred_check
      _
    $region31: #{tpu_custom_call.1} parent=1 // pred_check_branch
      %73 = sbr.rel (0) target = $region33
    $region32: #{tpu_custom_call.1} parent=1 // pred_region
      %75 = dma.done [#allocation6], 32
    $region33: #{tpu_custom_call.1} parent=1 // pred_fallthru
      _
    // Predicated region
    $region34: #{tpu_custom_call.1} parent=1 // pred_check
      _
    $region35: #{tpu_custom_call.1} parent=1 // pred_check_branch
      %77 = sbr.rel (0) target = $region37
    $region36: #{tpu_custom_call.1} parent=1 // pred_region
      %79 = dma.done [#allocation9], 2048
    $region37: #{tpu_custom_call.1} parent=1 // pred_fallthru
      _
    %v80 = vld [vmem:[#allocation2] sm:$0xff]
    %v81 = vld [vmem:[#allocation5] sm:$0xff]
    %v82 = vld [vmem:[#allocation5 + $0x8] sm:$0xff]
    %v83 = vld [vmem:[#allocation5 + $0x10] sm:$0xff]
    %v84 = vld [vmem:[#allocation5 + $0x18] sm:$0xff]
    %v85 = vld [vmem:[#allocation5 + $0x20] sm:$0xff]
    %v86 = vld [vmem:[#allocation5 + $0x28] sm:$0xff]
    %v87 = vld [vmem:[#allocation5 + $0x30] sm:$0xff]
    %v88 = vld [vmem:[#allocation5 + $0x38] sm:$0xff]
    %v89 = vld [vmem:[#allocation7] sm:$0x3]
    %v91 = vperm.slane %v89, 0
    %v92 = vperm.slane %v89, 1
    %vm95 = vcmask 261120
    %v97 = vsel %vm95, %v80, 0
    %99 = vmatpush.msra.mxu0 0.0
    %100 = vmatpush.msra.mxu0 0.0
    %101 = vmatpush.msra.mxu0 0.0
    %102 = vmatpush.msra.mxu0 0.0
    %103 = vmatpush.msra.mxu0 0.0
    %104 = vmatpush.msra.mxu0 0.0
    %105 = vmatpush.msra.mxu0 0.0
    %106 = vmatpush.msra.mxu0 0.0
    %107 = vmatpush.msra.mxu0 0.0
    %108 = vmatpush.msra.mxu0 0.0
    %109 = vmatpush.msra.mxu0 0.0
    %110 = vmatpush.msra.mxu0 0.0
    %111 = vmatpush.msra.mxu0 %v87
    %112 = vmatpush.msra.mxu0 %v85
    %113 = vmatpush.msra.mxu0 %v83
    %114 = vmatpush.msra.mxu0 %v81
    %115 = vmatmul.f32.gmra.mxu0 %v97
    %v116 = vpop.f32.mrf.mxu0
    %v117 = vadd.f32 %v91, %v116
    %118 = vdwg.mxu0
    %119 = vmatpush.msra.mxu0 0.0
    %120 = vmatpush.msra.mxu0 0.0
    %121 = vmatpush.msra.mxu0 0.0
    %122 = vmatpush.msra.mxu0 0.0
    %123 = vmatpush.msra.mxu0 0.0
    %124 = vmatpush.msra.mxu0 0.0
    %125 = vmatpush.msra.mxu0 0.0
    %126 = vmatpush.msra.mxu0 0.0
    %127 = vmatpush.msra.mxu0 0.0
    %128 = vmatpush.msra.mxu0 0.0
    %129 = vmatpush.msra.mxu0 0.0
    %130 = vmatpush.msra.mxu0 0.0
    %131 = vmatpush.msra.mxu0 %v88
    %132 = vmatpush.msra.mxu0 %v86
    %133 = vmatpush.msra.mxu0 %v84
    %134 = vmatpush.msra.mxu0 %v82
    %135 = vmatmul.f32.gmra.mxu0 %v97
    %v136 = vpop.f32.mrf.mxu0
    %v137 = vadd.f32 %v92, %v136
    %138 = vdwg.mxu0
    %v139 = vmax.f32 %v117, 0.0
    %v140 = vld [vmem:[#allocation8] sm:$0xff]
    %v141 = vld [vmem:[#allocation8 + $0x8] sm:$0xff]
    %v142 = vld [vmem:[#allocation8 + $0x10] sm:$0xff]
    %v143 = vld [vmem:[#allocation8 + $0x18] sm:$0xff]
    %v144 = vld [vmem:[#allocation8 + $0x20] sm:$0xff]
    %v145 = vld [vmem:[#allocation8 + $0x28] sm:$0xff]
    %v146 = vld [vmem:[#allocation8 + $0x30] sm:$0xff]
    %v147 = vld [vmem:[#allocation8 + $0x38] sm:$0xff]
    %v148 = vld [vmem:[#allocation8 + $0x40] sm:$0xff]
    %v149 = vld [vmem:[#allocation8 + $0x48] sm:$0xff]
    %v150 = vld [vmem:[#allocation8 + $0x50] sm:$0xff]
    %v151 = vld [vmem:[#allocation8 + $0x58] sm:$0xff]
    %v152 = vld [vmem:[#allocation8 + $0x60] sm:$0xff]
    %v153 = vld [vmem:[#allocation8 + $0x68] sm:$0xff]
    %v154 = vld [vmem:[#allocation8 + $0x70] sm:$0xff]
    %v155 = vld [vmem:[#allocation8 + $0x78] sm:$0xff]
    %v156 = vld [vmem:[%s4] sm:$0x1]
    %v158 = vperm.slane %v156, 0
    %160 = vmatpush.msra.mxu0 %v155
    %161 = vmatpush.msra.mxu0 %v154
    %162 = vmatpush.msra.mxu0 %v153
    %163 = vmatpush.msra.mxu0 %v152
    %164 = vmatpush.msra.mxu0 %v151
    %165 = vmatpush.msra.mxu0 %v150
    %166 = vmatpush.msra.mxu0 %v149
    %167 = vmatpush.msra.mxu0 %v148
    %168 = vmatpush.msra.mxu0 %v147
    %169 = vmatpush.msra.mxu0 %v146
    %170 = vmatpush.msra.mxu0 %v145
    %171 = vmatpush.msra.mxu0 %v144
    %172 = vmatpush.msra.mxu0 %v143
    %173 = vmatpush.msra.mxu0 %v142
    %174 = vmatpush.msra.mxu0 %v141
    %175 = vmatpush.msra.mxu0 %v140
    %176 = vmatmul.f32.gmra.mxu0 %v139
    %v177 = vpop.f32.mrf.mxu0
    %v178 = vadd.f32 %v158, %v177
    %179 = vdwg.mxu0
    %v180 = vmax.f32 %v178, 0.0
    %v181 = vadd.f32 %v180, %v137
    %vm182 = vcmask 392192
    %183 = vst.msk [vmem:[#allocation10] sm:$0xff] %vm182, %v181
    // Predicated region
    $region38: #{tpu_custom_call.1} parent=1 // pred_check
      _
    $region39: #{tpu_custom_call.1} parent=1 // pred_check_branch
      %185 = sbr.rel (0) target = $region41
    $region40: #{tpu_custom_call.1} parent=1 // pred_region
      %187 = vsyncadd [#allocation4], 0
      %s189 = sshll.u32 [#allocation10], 4
      %s190 = int_to_ptr.vmem [resolvable:$true] %s189
      %s191 = sshll.u32 %s5, 4
      %s192 = int_to_ptr.hbm [resolvable:$true] %s191
      %194 = dma.vmem_to_hbm [thread:$0]  %s190, 128, %s192, [#allocation4]
    $region41: #{tpu_custom_call.1} parent=1 // pred_fallthru
      _
    // Predicated region
    $region42: #{tpu_custom_call.1} parent=1 // pred_check
      _
    $region43: #{tpu_custom_call.1} parent=1 // pred_check_branch
      %196 = sbr.rel (0) target = $region45
    $region44: #{tpu_custom_call.1} parent=1 // pred_region
      %198 = dma.done [#allocation4], 128
    $region45: #{tpu_custom_call.1} parent=1 // pred_fallthru
      _
    %199 = vsyncpa [#allocation3], 1
    %200 = vsyncpa [#allocation6], 1
    %201 = vsyncpa [#allocation9], 1
    %202 = vsyncpa [#allocation4], 1

</llo_original>
